<compile_context>
chip_gen: v6e
topology: v6e:2x2x1
jax: 0.10.0
libtpu: 0.0.40
codegen_flags: <defaults>
</compile_context>

<pallas_src>
import functools
import math

import jax
import jax.numpy as jnp
from jax.experimental import pallas as pl
from jax.experimental.pallas import tpu as pltpu


# --------------------------------- kernel ------------------------------------
def _drop_path_kernel(keep_ref, x_ref, o_ref, *, inv_keep_prob, b_tile):
    """One (batch-block, row-tile) block.

    Block shape is (b_tile, tr, L). For each of the b_tile samples in this block,
    either scale the slab by 1/keep_prob (keep) or write zeros (drop). The keep
    decisions live in SMEM (scalar prefetch), so no broadcast traffic in VMEM,
    and the scale is a compile-time constant -> math stays in the input dtype.
    """
    g = pl.program_id(0)
    for i in range(b_tile):
        keep = keep_ref[g * b_tile + i]        # int32 scalar in SMEM, 0 or 1

        @pl.when(keep != 0)
        def _scale(i=i):
            o_ref[i] = (x_ref[i] * inv_keep_prob).astype(o_ref.dtype)

        @pl.when(keep == 0)
        def _zero(i=i):
            o_ref[i] = jnp.zeros(o_ref.shape[1:], o_ref.dtype)


# ------------------------------ tiling helpers --------------------------------
def _vmem_capacity_bytes():
    """Physical VMEM of the local chip; conservative 64 MiB (v7x) on failure."""
    try:
        cap = int(pltpu.get_tpu_info().vmem_capacity_bytes)
        if cap > 0:
            return cap
    except Exception:
        pass
    return 64 * 1024 * 1024


def _lane_dense_inner(inner_shape):
    """Factor prod(inner) into (rows, L) with L a large multiple of 128 when
    possible (the op is per-sample elementwise, so any inner layout is valid).
    Falls back to the original trailing dim otherwise (correct, just masked)."""
    total = int(math.prod(inner_shape)) if len(inner_shape) else 1
    for L in (2048, 1024, 512, 384, 256, 128):
        if total % L == 0:
            return total // L, L
    cols = int(inner_shape[-1]) if len(inner_shape) else 1
    return total // cols, cols


def _sublane_multiple(dtype):
    """Row-tile alignment so sub-32-bit dtypes keep full packed vregs."""
    itemsize = jnp.dtype(dtype).itemsize
    return max(8, 32 // max(1, itemsize))      # 8 (f32), 16 (bf16), 32 (int8/fp8)


# --------------------------------- wrapper ------------------------------------
def _drop_path_pallas(x, keep_mask, keep_prob, *, block_budget_bytes=None):
    """x: (B, ...) array. keep_mask: (B,) int {0,1}. Applies x * mask / keep_prob."""
    if x.size == 0:
        return x

    orig_shape = x.shape
    B = int(x.shape[0])
    rows, L = _lane_dense_inner(x.shape[1:])
    x3 = x.reshape(B, rows, L)
    itemsize = jnp.dtype(x3.dtype).itemsize

    vmem_cap = _vmem_capacity_bytes()
    if block_budget_bytes is None:
        # ~6 MiB/block on v7x (64 MiB VMEM), ~12 MiB/block on v5e/v6e (128 MiB).
        block_budget_bytes = max(2 * 1024 * 1024,
                                 min(12 * 1024 * 1024, vmem_cap // 10))
    budget = int(block_budget_bytes)

    slab_bytes = rows * L * itemsize
    sub = _sublane_multiple(x3.dtype)

    if slab_bytes <= budget:
        # Small per-sample slab: batch several samples per block to amortize the
        # fixed per-grid-step overhead.
        tr = rows
        max_bt = min(B, 16, max(1, budget // max(1, slab_bytes)))
        if B >= 4:
            max_bt = min(max_bt, B // 2)   # keep >=2 grid steps (v7x megacore)
        b_tile = 1
        for d in range(max_bt, 0, -1):
            if B % d == 0:
                b_tile = d
                break
    else:
        # Large slab: per-sample, bounded sublane-aligned row tiles under the
        # budget; ragged last tile handled via a cdiv grid (Pallas pads/masks).
        b_tile = 1
        row_bytes = L * itemsize
        tr = max(sub, (budget // max(1, row_bytes)) // sub * sub)
        tr = min(tr, rows)
        # (Extremely wide single rows could still exceed the budget; column
        #  tiling is not needed for realistic activation shapes.)

    num_row_blocks = pl.cdiv(rows, tr)
    grid = (B // b_tile, num_row_blocks)

    block_bytes = b_tile * tr * L * itemsize
    # in + out, double-buffered (~4x block) + headroom; never above 0.75x VMEM.
    vmem_limit = int(min(max(4 * block_bytes + (2 << 20), 16 << 20),
                         (vmem_cap * 3) // 4))

    kernel = functools.partial(_drop_path_kernel,
                               inv_keep_prob=float(1.0 / keep_prob),
                               b_tile=int(b_tile))

    out = pl.pallas_call(
        kernel,
        out_shape=jax.ShapeDtypeStruct((B, rows, L), x3.dtype),
        grid_spec=pltpu.PrefetchScalarGridSpec(
            num_scalar_prefetch=1,
            grid=grid,
            in_specs=[pl.BlockSpec((b_tile, tr, L),
                                   lambda g, r, keep: (g, r, 0))],
            out_specs=pl.BlockSpec((b_tile, tr, L),
                                   lambda g, r, keep: (g, r, 0)),
        ),
        compiler_params=pltpu.CompilerParams(
            dimension_semantics=("parallel", "parallel"),
            vmem_limit_bytes=vmem_limit),
        cost_estimate=pl.CostEstimate(
            flops=int(x3.size),
            transcendentals=0,
            bytes_accessed=int(2 * x3.size * itemsize + B * 4)),
    )(keep_mask.astype(jnp.int32), x3)

    return out.reshape(orig_shape)


def drop_path(x, drop_prob: float = 0.0, training: bool = False, *, key=None):
    """Forward-equivalent of the PyTorch drop_path function."""
    if drop_prob == 0.0 or not training:
        return x                                   # identity, matches PyTorch
    if key is None:
        raise ValueError("a PRNG key is required when training with drop_prob > 0")
    keep_prob = 1.0 - drop_prob
    B = x.shape[0]
    # torch: random_tensor = keep_prob + U[0,1); floor -> Bernoulli(keep_prob)
    u = jax.random.uniform(key, (B,), dtype=jnp.float32)
    keep_mask = jnp.floor(keep_prob + u).astype(jnp.int32)
    return _drop_path_pallas(x, keep_mask, keep_prob)


class DropPath:
    """Module-style wrapper mirroring the nn.Module DropPath."""

    def __init__(self, drop_prob=None):
        self.drop_prob = drop_prob
        self.training = False

    def __call__(self, x, *, key=None):
        return drop_path(x, self.drop_prob or 0.0, self.training, key=key)


# ----------------------------- reference (plain JAX) --------------------------
def drop_path_reference(x, keep_mask, keep_prob):
    """Exact PyTorch math: x.div(keep_prob) * mask (mask broadcast over inner dims)."""
    shape = (x.shape[0],) + (1,) * (x.ndim - 1)
    r = keep_mask.astype(x.dtype).reshape(shape)
    return x / keep_prob * r


# ----------------------------------- main --------------------------------------
if __name__ == "__main__":
    root = jax.random.PRNGKey(0)
    kx1, kmask, kx2, kx3 = jax.random.split(root, 4)

    drop_prob = 0.25
    keep_prob = 1.0 - drop_prob

    # ---- Case 1: ViT-ish residual branch (B, tokens, channels), f32 ----------
    B, N, C = 8, 16, 128
    x = jax.random.normal(kx1, (B, N, C), jnp.float32)

    # Eval / drop_prob == 0 paths are identities, exactly like the PyTorch module.
    assert drop_path(x, drop_prob, training=False) is x
    assert drop_path(x, 0.0, training=True) is x

    # Handcrafted mask guarantees both the keep and the drop branch execute.
    keep_mask = jnp.array([1, 0, 1, 1, 0, 1, 1, 0], dtype=jnp.int32)
    out = jax.block_until_ready(_drop_path_pallas(x, keep_mask, keep_prob))
    ref = drop_path_reference(x, keep_mask, keep_prob)
    assert out.shape == x.shape and out.dtype == x.dtype
    assert jnp.allclose(out, ref, atol=1e-5, rtol=1e-5), (
        f"case1 max abs err {jnp.max(jnp.abs(out - ref))}")

    # Public wrapper end-to-end (same key -> same mask -> same reference).
    u = jax.random.uniform(kmask, (B,), dtype=jnp.float32)
    ref_mask = jnp.floor(keep_prob + u).astype(jnp.int32)
    out_wrap = jax.block_until_ready(drop_path(x, drop_prob, training=True, key=kmask))
    assert jnp.allclose(out_wrap, drop_path_reference(x, ref_mask, keep_prob),
                        atol=1e-5, rtol=1e-5)

    # ---- Case 2: 4-D conv-style activation, bf16 (native-dtype path, lane-dense
    #      re-factorization of the inner dims, batched samples per block) --------
    x2 = jax.random.normal(kx2, (2, 12, 8, 16), jnp.float32).astype(jnp.bfloat16)
    keep_mask2 = jnp.array([1, 0], dtype=jnp.int32)
    out2 = jax.block_until_ready(_drop_path_pallas(x2, keep_mask2, keep_prob))
    ref2 = (x2.astype(jnp.float32) / keep_prob *
            keep_mask2.astype(jnp.float32).reshape(2, 1, 1, 1)).astype(jnp.bfloat16)
    assert out2.shape == x2.shape and out2.dtype == jnp.bfloat16
    assert jnp.allclose(out2.astype(jnp.float32), ref2.astype(jnp.float32),
                        atol=1e-2, rtol=2e-2)

    # ---- Case 3: force the row-tiled path (tiny budget) to exercise the bounded
    #      cdiv tiling with a ragged last row tile -------------------------------
    x3 = jax.random.normal(kx3, (2, 40, 33, 128), jnp.float32)
    keep_mask3 = jnp.array([0, 1], dtype=jnp.int32)
    out3 = jax.block_until_ready(
        _drop_path_pallas(x3, keep_mask3, keep_prob, block_budget_bytes=64 * 1024))
    ref3 = drop_path_reference(x3, keep_mask3, keep_prob)
    assert out3.shape == x3.shape
    assert jnp.allclose(out3, ref3, atol=1e-5, rtol=1e-5), (
        f"case3 max abs err {jnp.max(jnp.abs(out3 - ref3))}")

    print("KERNEL_OK")
</pallas_src>

<mosaic_0001>
module attributes {stable_mosaic.version = 11 : i64} {
  func.func @_drop_path_kernel(%arg0: i32, %arg1: i32, %arg2: memref<8xi32, #tpu.memory_space<smem>>, %arg3: memref<4x1x2048xf32, #tpu.memory_space<vmem>>, %arg4: memref<4x1x2048xf32, #tpu.memory_space<vmem>>) attributes {dimension_semantics = [#tpu.dimension_semantics<parallel>, #tpu.dimension_semantics<parallel>], iteration_bounds = array<i64: 2, 1>, scalar_prefetch = 1 : i64, scratch_operands = 0 : i64, tpu.core_type = #tpu.core_type<tc>, window_params = [{transform_indices = @transform_0, window_bounds = array<i64: 4, 1, 2048>}, {transform_indices = @transform_1, window_bounds = array<i64: 4, 1, 2048>}]} {
    %c4_i32 = arith.constant 4 : i32
    %0 = arith.muli %arg0, %c4_i32 : i32
    %c0_i32 = arith.constant 0 : i32
    %1 = arith.addi %0, %c0_i32 : i32
    %2 = arith.index_cast %1 : i32 to index
    %3 = memref.load %arg2[%2] : memref<8xi32, #tpu.memory_space<smem>>
    %c0_i32_0 = arith.constant 0 : i32
    %4 = arith.cmpi ne, %3, %c0_i32_0 : i32
    %5 = arith.extui %4 : i1 to i32
    %c0_i32_1 = arith.constant 0 : i32
    %6 = arith.cmpi ne, %5, %c0_i32_1 : i32
    scf.if %6 {
      %c0 = arith.constant 0 : index
      %c0_19 = arith.constant 0 : index
      %c0_20 = arith.constant 0 : index
      %40 = vector.load %arg3[%c0, %c0_19, %c0_20] : memref<4x1x2048xf32, #tpu.memory_space<vmem>>, vector<1x1x2048xf32>
      %41 = vector.shape_cast %40 : vector<1x1x2048xf32> to vector<1x2048xf32>
      %cst = arith.constant 1.33333337 : f32
      %42 = vector.broadcast %cst : f32 to vector<1x2048xf32>
      %43 = arith.mulf %41, %42 : vector<1x2048xf32>
      %c0_21 = arith.constant 0 : index
      %c0_22 = arith.constant 0 : index
      %c0_23 = arith.constant 0 : index
      %44 = vector.load %arg4[%c0_21, %c0_22, %c0_23] : memref<4x1x2048xf32, #tpu.memory_space<vmem>>, vector<1x1x2048xf32>
      %45 = vector.shape_cast %44 : vector<1x1x2048xf32> to vector<1x2048xf32>
      %46 = vector.shape_cast %43 : vector<1x2048xf32> to vector<1x1x2048xf32>
      tpu.vector_store %arg4[%c0_21, %c0_22, %c0_23], %46 {strides = array<i32>} : memref<4x1x2048xf32, #tpu.memory_space<vmem>>, vector<1x1x2048xf32>,
    } else {
    }
    %c0_i32_2 = arith.constant 0 : i32
    %7 = arith.cmpi eq, %3, %c0_i32_2 : i32
    %8 = arith.extui %7 : i1 to i32
    %c0_i32_3 = arith.constant 0 : i32
    %9 = arith.cmpi ne, %8, %c0_i32_3 : i32
    scf.if %9 {
      %cst = arith.constant 0.000000e+00 : f32
      %40 = vector.broadcast %cst : f32 to vector<1x2048xf32>
      %c0 = arith.constant 0 : index
      %c0_19 = arith.constant 0 : index
      %c0_20 = arith.constant 0 : index
      %41 = vector.load %arg4[%c0, %c0_19, %c0_20] : memref<4x1x2048xf32, #tpu.memory_space<vmem>>, vector<1x1x2048xf32>
      %42 = vector.shape_cast %41 : vector<1x1x2048xf32> to vector<1x2048xf32>
      %43 = vector.shape_cast %40 : vector<1x2048xf32> to vector<1x1x2048xf32>
      tpu.vector_store %arg4[%c0, %c0_19, %c0_20], %43 {strides = array<i32>} : memref<4x1x2048xf32, #tpu.memory_space<vmem>>, vector<1x1x2048xf32>,
    } else {
    }
    %c4_i32_4 = arith.constant 4 : i32
    %10 = arith.muli %arg0, %c4_i32_4 : i32
    %c1_i32 = arith.constant 1 : i32
    %11 = arith.addi %10, %c1_i32 : i32
    %12 = arith.index_cast %11 : i32 to index
    %13 = memref.load %arg2[%12] : memref<8xi32, #tpu.memory_space<smem>>
    %c0_i32_5 = arith.constant 0 : i32
    %14 = arith.cmpi ne, %13, %c0_i32_5 : i32
    %15 = arith.extui %14 : i1 to i32
    %c0_i32_6 = arith.constant 0 : i32
    %16 = arith.cmpi ne, %15, %c0_i32_6 : i32
    scf.if %16 {
      %c1 = arith.constant 1 : index
      %c0 = arith.constant 0 : index
      %c0_19 = arith.constant 0 : index
      %40 = vector.load %arg3[%c1, %c0, %c0_19] : memref<4x1x2048xf32, #tpu.memory_space<vmem>>, vector<1x1x2048xf32>
      %41 = vector.shape_cast %40 : vector<1x1x2048xf32> to vector<1x2048xf32>
      %cst = arith.constant 1.33333337 : f32
      %42 = vector.broadcast %cst : f32 to vector<1x2048xf32>
      %43 = arith.mulf %41, %42 : vector<1x2048xf32>
      %c1_20 = arith.constant 1 : index
      %c0_21 = arith.constant 0 : index
      %c0_22 = arith.constant 0 : index
      %44 = vector.load %arg4[%c1_20, %c0_21, %c0_22] : memref<4x1x2048xf32, #tpu.memory_space<vmem>>, vector<1x1x2048xf32>
      %45 = vector.shape_cast %44 : vector<1x1x2048xf32> to vector<1x2048xf32>
      %46 = vector.shape_cast %43 : vector<1x2048xf32> to vector<1x1x2048xf32>
      tpu.vector_store %arg4[%c1_20, %c0_21, %c0_22], %46 {strides = array<i32>} : memref<4x1x2048xf32, #tpu.memory_space<vmem>>, vector<1x1x2048xf32>,
    } else {
    }
    %c0_i32_7 = arith.constant 0 : i32
    %17 = arith.cmpi eq, %13, %c0_i32_7 : i32
    %18 = arith.extui %17 : i1 to i32
    %c0_i32_8 = arith.constant 0 : i32
    %19 = arith.cmpi ne, %18, %c0_i32_8 : i32
    scf.if %19 {
      %cst = arith.constant 0.000000e+00 : f32
      %40 = vector.broadcast %cst : f32 to vector<1x2048xf32>
      %c1 = arith.constant 1 : index
      %c0 = arith.constant 0 : index
      %c0_19 = arith.constant 0 : index
      %41 = vector.load %arg4[%c1, %c0, %c0_19] : memref<4x1x2048xf32, #tpu.memory_space<vmem>>, vector<1x1x2048xf32>
      %42 = vector.shape_cast %41 : vector<1x1x2048xf32> to vector<1x2048xf32>
      %43 = vector.shape_cast %40 : vector<1x2048xf32> to vector<1x1x2048xf32>
      tpu.vector_store %arg4[%c1, %c0, %c0_19], %43 {strides = array<i32>} : memref<4x1x2048xf32, #tpu.memory_space<vmem>>, vector<1x1x2048xf32>,
    } else {
    }
    %c4_i32_9 = arith.constant 4 : i32
    %20 = arith.muli %arg0, %c4_i32_9 : i32
    %c2_i32 = arith.constant 2 : i32
    %21 = arith.addi %20, %c2_i32 : i32
    %22 = arith.index_cast %21 : i32 to index
    %23 = memref.load %arg2[%22] : memref<8xi32, #tpu.memory_space<smem>>
    %c0_i32_10 = arith.constant 0 : i32
    %24 = arith.cmpi ne, %23, %c0_i32_10 : i32
    %25 = arith.extui %24 : i1 to i32
    %c0_i32_11 = arith.constant 0 : i32
    %26 = arith.cmpi ne, %25, %c0_i32_11 : i32
    scf.if %26 {
      %c2 = arith.constant 2 : index
      %c0 = arith.constant 0 : index
      %c0_19 = arith.constant 0 : index
      %40 = vector.load %arg3[%c2, %c0, %c0_19] : memref<4x1x2048xf32, #tpu.memory_space<vmem>>, vector<1x1x2048xf32>
      %41 = vector.shape_cast %40 : vector<1x1x2048xf32> to vector<1x2048xf32>
      %cst = arith.constant 1.33333337 : f32
      %42 = vector.broadcast %cst : f32 to vector<1x2048xf32>
      %43 = arith.mulf %41, %42 : vector<1x2048xf32>
      %c2_20 = arith.constant 2 : index
      %c0_21 = arith.constant 0 : index
      %c0_22 = arith.constant 0 : index
      %44 = vector.load %arg4[%c2_20, %c0_21, %c0_22] : memref<4x1x2048xf32, #tpu.memory_space<vmem>>, vector<1x1x2048xf32>
      %45 = vector.shape_cast %44 : vector<1x1x2048xf32> to vector<1x2048xf32>
      %46 = vector.shape_cast %43 : vector<1x2048xf32> to vector<1x1x2048xf32>
      tpu.vector_store %arg4[%c2_20, %c0_21, %c0_22], %46 {strides = array<i32>} : memref<4x1x2048xf32, #tpu.memory_space<vmem>>, vector<1x1x2048xf32>,
    } else {
    }
    %c0_i32_12 = arith.constant 0 : i32
    %27 = arith.cmpi eq, %23, %c0_i32_12 : i32
    %28 = arith.extui %27 : i1 to i32
    %c0_i32_13 = arith.constant 0 : i32
    %29 = arith.cmpi ne, %28, %c0_i32_13 : i32
    scf.if %29 {
      %cst = arith.constant 0.000000e+00 : f32
      %40 = vector.broadcast %cst : f32 to vector<1x2048xf32>
      %c2 = arith.constant 2 : index
      %c0 = arith.constant 0 : index
      %c0_19 = arith.constant 0 : index
      %41 = vector.load %arg4[%c2, %c0, %c0_19] : memref<4x1x2048xf32, #tpu.memory_space<vmem>>, vector<1x1x2048xf32>
      %42 = vector.shape_cast %41 : vector<1x1x2048xf32> to vector<1x2048xf32>
      %43 = vector.shape_cast %40 : vector<1x2048xf32> to vector<1x1x2048xf32>
      tpu.vector_store %arg4[%c2, %c0, %c0_19], %43 {strides = array<i32>} : memref<4x1x2048xf32, #tpu.memory_space<vmem>>, vector<1x1x2048xf32>,
    } else {
    }
    %c4_i32_14 = arith.constant 4 : i32
    %30 = arith.muli %arg0, %c4_i32_14 : i32
    %c3_i32 = arith.constant 3 : i32
    %31 = arith.addi %30, %c3_i32 : i32
    %32 = arith.index_cast %31 : i32 to index
    %33 = memref.load %arg2[%32] : memref<8xi32, #tpu.memory_space<smem>>
    %c0_i32_15 = arith.constant 0 : i32
    %34 = arith.cmpi ne, %33, %c0_i32_15 : i32
    %35 = arith.extui %34 : i1 to i32
    %c0_i32_16 = arith.constant 0 : i32
    %36 = arith.cmpi ne, %35, %c0_i32_16 : i32
    scf.if %36 {
      %c3 = arith.constant 3 : index
      %c0 = arith.constant 0 : index
      %c0_19 = arith.constant 0 : index
      %40 = vector.load %arg3[%c3, %c0, %c0_19] : memref<4x1x2048xf32, #tpu.memory_space<vmem>>, vector<1x1x2048xf32>
      %41 = vector.shape_cast %40 : vector<1x1x2048xf32> to vector<1x2048xf32>
      %cst = arith.constant 1.33333337 : f32
      %42 = vector.broadcast %cst : f32 to vector<1x2048xf32>
      %43 = arith.mulf %41, %42 : vector<1x2048xf32>
      %c3_20 = arith.constant 3 : index
      %c0_21 = arith.constant 0 : index
      %c0_22 = arith.constant 0 : index
      %44 = vector.load %arg4[%c3_20, %c0_21, %c0_22] : memref<4x1x2048xf32, #tpu.memory_space<vmem>>, vector<1x1x2048xf32>
      %45 = vector.shape_cast %44 : vector<1x1x2048xf32> to vector<1x2048xf32>
      %46 = vector.shape_cast %43 : vector<1x2048xf32> to vector<1x1x2048xf32>
      tpu.vector_store %arg4[%c3_20, %c0_21, %c0_22], %46 {strides = array<i32>} : memref<4x1x2048xf32, #tpu.memory_space<vmem>>, vector<1x1x2048xf32>,
    } else {
    }
    %c0_i32_17 = arith.constant 0 : i32
    %37 = arith.cmpi eq, %33, %c0_i32_17 : i32
    %38 = arith.extui %37 : i1 to i32
    %c0_i32_18 = arith.constant 0 : i32
    %39 = arith.cmpi ne, %38, %c0_i32_18 : i32
    scf.if %39 {
      %cst = arith.constant 0.000000e+00 : f32
      %40 = vector.broadcast %cst : f32 to vector<1x2048xf32>
      %c3 = arith.constant 3 : index
      %c0 = arith.constant 0 : index
      %c0_19 = arith.constant 0 : index
      %41 = vector.load %arg4[%c3, %c0, %c0_19] : memref<4x1x2048xf32, #tpu.memory_space<vmem>>, vector<1x1x2048xf32>
      %42 = vector.shape_cast %41 : vector<1x1x2048xf32> to vector<1x2048xf32>
      %43 = vector.shape_cast %40 : vector<1x2048xf32> to vector<1x1x2048xf32>
      tpu.vector_store %arg4[%c3, %c0, %c0_19], %43 {strides = array<i32>} : memref<4x1x2048xf32, #tpu.memory_space<vmem>>, vector<1x1x2048xf32>,
    } else {
    }
    return
  }
  func.func @transform_0(%arg0: i32, %arg1: i32, %arg2: memref<8xi32, #tpu.memory_space<smem>>) -> (i32, i32, i32) {
    %c0_i32 = arith.constant 0 : i32
    %c0_i32_0 = arith.constant 0 : i32
    return %arg0, %arg1, %c0_i32 : i32, i32, i32
  }
  func.func @transform_1(%arg0: i32, %arg1: i32, %arg2: memref<8xi32, #tpu.memory_space<smem>>) -> (i32, i32, i32) {
    %c0_i32 = arith.constant 0 : i32
    %c0_i32_0 = arith.constant 0 : i32
    return %arg0, %arg1, %c0_i32 : i32, i32, i32
  }
}

</mosaic_0001>

<llo_original>
// kernel: tpu_custom_call.1
$region0: #{tpu_custom_call.1}
  #allocation0 [shape = 'u32[]', space=smem, size = 0x4, offset = 0x4, fixed_abs, tag = 'smem constant byte address 0x4 - core index']
  #allocation1 [shape = 'u32[144,128]{1,0:T(1,128)}', space=vmem, size = 0x12000, scoped, tag = 'internal scratch']
  #allocation2 [shape = 's32[1]{0}', space=sflag, size = 0x4, scoped, tag = 'scoped memory for tpu_custom_call.1']
  #allocation3 [shape = 'u8[512]{0}', space=smem, size = 0x200, scoped, tag = 'prefetched SMEM operand 0']
  %s0 = inlined_call_operand.hbm [shape: s32[8], index: 0, kind: input, shape index: {}]
  %s1 = inlined_call_operand.hbm [shape: f32[8,1,2048], index: 1, kind: input, shape index: {}]
  %s2 = inlined_call_operand.hbm [shape: f32[8,1,2048], index: 2, kind: output, shape index: {}]
  %s3 = sld [smem:[#allocation0]]
  $region73: #{tpu_custom_call.1} parent=0
    _
  %s5 = ssub.s32 1, %s3
  %s6 = scalar_select 0, %s5, %s3
  %8 = dma.hbm_to_smem %s0, 16, [#allocation3], [#allocation2]
  %9 = dma.done [#allocation2], 16
  %10 = sfence
  $region1: #{tpu_custom_call.1} parent=0
    #allocation4 [shape = 'u8[65536]{0}', space=vmem, size = 0x10000, scoped, tag = 'input window, operand 1']
    #allocation5 [shape = 's32[2]{0}', space=sflag, size = 0x8, scoped, tag = 'scoped memory for tpu_custom_call.1']
    #allocation6 [shape = 's32[2]{0}', space=sflag, size = 0x8, scoped, tag = 'scoped memory for tpu_custom_call.1']
    #allocation7 [shape = 'u8[65536]{0}', space=vmem, size = 0x10000, scoped, tag = 'output window, operand 0']
    %11 = vsyncpa [#allocation5], 0
    %s12 = scalar_lea.sflag [#allocation5], 1
    %13 = vsyncpa %s12, 0
    %14 = vsyncpa [#allocation6], 0
    %s15 = scalar_lea.sflag [#allocation6], 1
    %16 = vsyncpa %s15, 0
    loop: start=0, step=1, limit=4
    $region2: #{tpu_custom_call.1} parent=1 // loop_pre_header
      _
    $region3: #{tpu_custom_call.1} parent=1 // loop_header
      %s18 = sphi 0, %s22
      %p19 = scmp.ge.s32.totalorder %s18, 4
      %s25 = sphi 0, %s37
      %s26 = sphi 0, %s33
      %s27 = sphi 0, %s25
      %s28 = sphi 0, %s26
      %s29 = sphi 0, %s27
      %s30 = sphi 0, %s28
      %s42 = sphi 0, %s44
      %s45 = sphi 0, %s42
      %s46 = sphi 0, %s45
      %s62 = sphi 0, %s46
      %s70 = sphi 0, %s72
      %s73 = sphi 0, %s70
      %s74 = sphi 0, %s73
      %s90 = sphi 0, %s74
    $region4: #{tpu_custom_call.1} parent=1 // loop_header_branch
      %21 = sbr.rel (%p19) target = $region8
    $region5: #{tpu_custom_call.1} parent=1 // loop_body
      %s23 = ssub.s32 %s18, 1
      %s24 = ssub.s32 %s18, 2
      %s31 = sadd.s32 1, %s26
      %p32 = scmp.ge.s32.totalorder %s31, 1
      %s33 = scalar_select %p32, 0, %s31
      %s34 = sadd.s32 1, %s25
      %s35 = scalar_select %p32, %s34, %s25
      %p36 = scmp.ge.s32.totalorder %s35, 2
      %s37 = scalar_select %p36, 0, %s35
      %s38 = ssub.s32 %s25, %s37
      %s39 = ssub.s32 %s26, %s33
      %s40 = sor.u32 %s38, %s39
      %p41 = scmp.eq.s32.totalorder %s40, 0
      %s43 = sadd.s32 %s42, 1
      %s44 = scalar_select %p41, %s42, %s43
      %p47 = pneg %p41
      %p48 = scmp.eq.s32.totalorder %s18, 1
      %p49 = por %p47, %p48
      %p50 = scmp.ne.s32.totalorder %s42, %s45
      %p51 = scmp.eq.s32.totalorder %s18, 0
      %p52 = por %p50, %p51
      %p53 = scmp.ne.s32.totalorder %s42, %s45
      %p54 = scmp.eq.s32.totalorder %s23, 1
      %p55 = por %p53, %p54
      %p56 = scmp.ne.s32.totalorder %s45, %s46
      %p57 = scmp.eq.s32.totalorder %s23, 0
      %p58 = por %p56, %p57
      %p59 = scmp.ne.s32.totalorder %s45, %s46
      %p60 = scmp.eq.s32.totalorder %s24, 1
      %p61 = por %p59, %p60
      %p63 = scmp.ne.s32.totalorder %s46, %s62
      %p64 = scmp.eq.s32.totalorder %s24, 0
      %p65 = por %p63, %p64
      %s66 = ssub.s32 %s25, %s37
      %s67 = ssub.s32 %s26, %s33
      %s68 = sor.u32 %s66, %s67
      %p69 = scmp.eq.s32.totalorder %s68, 0
      %s71 = sadd.s32 %s70, 1
      %s72 = scalar_select %p69, %s70, %s71
      %p75 = pneg %p69
      %p76 = scmp.eq.s32.totalorder %s18, 1
      %p77 = por %p75, %p76
      %p78 = scmp.ne.s32.totalorder %s70, %s73
      %p79 = scmp.eq.s32.totalorder %s18, 0
      %p80 = por %p78, %p79
      %p81 = scmp.ne.s32.totalorder %s70, %s73
      %p82 = scmp.eq.s32.totalorder %s23, 1
      %p83 = por %p81, %p82
      %p84 = scmp.ne.s32.totalorder %s73, %s74
      %p85 = scmp.eq.s32.totalorder %s23, 0
      %p86 = por %p84, %p85
      %p87 = scmp.ne.s32.totalorder %s73, %s74
      %p88 = scmp.eq.s32.totalorder %s24, 1
      %p89 = por %p87, %p88
      %p91 = scmp.ne.s32.totalorder %s74, %s90
      %p92 = scmp.eq.s32.totalorder %s24, 0
      %p93 = por %p91, %p92
      %p94 = scmp.le.s32.totalorder 1, %s18
      %p95 = scmp.lt.s32.totalorder %s18, 3
      %p96 = pnand %p94, %p95
      %p97 = pneg %p96
      // Predicated region
      $region9: #{tpu_custom_call.1} parent=5 // pred_check
        _
      $region10: #{tpu_custom_call.1} parent=5 // pred_check_branch
        %99 = sbr.rel (%p96) target = $region12
      $region11: #{tpu_custom_call.1} parent=5 // pred_region
        %s100 = ssub.s32 %s18, 1
      $region12: #{tpu_custom_call.1} parent=5 // pred_fallthru
        _
      %p101 = scmp.lt.s32.totalorder %s18, 2
      // Predicated region
      $region13: #{tpu_custom_call.1} parent=5 // pred_check
        %p102 = pneg %p101
      $region14: #{tpu_custom_call.1} parent=5 // pred_check_branch
        %104 = sbr.rel (%p102) target = $region16
      $region15: #{tpu_custom_call.1} parent=5 // pred_region
        // Predicated region
        $region17: #{tpu_custom_call.1} parent=15 // pred_check
          %p105 = pneg %p52
        $region18: #{tpu_custom_call.1} parent=15 // pred_check_branch
          %107 = sbr.rel (%p105) target = $region20
        $region19: #{tpu_custom_call.1} parent=15 // pred_region
          %s108 = sand.u32 %s42, 1
          %s109 = scalar_lea.sflag [#allocation5], %s108
          %s110 = sand.u32 %s42, 1
          %s111 = smul.addr %s110, 64
          %s112 = scalar_lea.vmem [#allocation4], %s111
          %s113 = smul.u32 4, %s25
          %s115 = ssub.s32 1024, 1024
          %116 = vsyncadd %s109, %s115
          %s117 = smul.addr %s26, 16
          %s118 = smul.addr %s113, 16
          %s119 = sadd.s32 %s117, %s118
          %s120 = smul.addr %s119, 16
          %s121 = scalar_lea.hbm %s1, %s120
          %s122 = sshll.u32 %s112, 4
          %s123 = int_to_ptr.vmem [resolvable:$true] %s122
          %128 = dma.hbm_to_vmem [thread:$0]  %s121, 1024, %s123, %s109, 256, 256, 16
        $region20: #{tpu_custom_call.1} parent=15 // pred_fallthru
          _
      $region16: #{tpu_custom_call.1} parent=5 // pred_fallthru
        _
      %p129 = scmp.le.s32.totalorder 1, %s18
      %p130 = scmp.lt.s32.totalorder %s18, 3
      %p131 = pnand %p129, %p130
      %p132 = pneg %p131
      // Predicated region
      $region21: #{tpu_custom_call.1} parent=5 // pred_check
        _
      $region22: #{tpu_custom_call.1} parent=5 // pred_check_branch
        %134 = sbr.rel (%p131) target = $region24
      $region23: #{tpu_custom_call.1} parent=5 // pred_region
        %s135 = ssub.s32 %s18, 1
        %s136 = sand.u32 %s45, 1
        %s137 = scalar_lea.sflag [#allocation5], %s136
        %s138 = sand.u32 %s45, 1
        %s139 = smul.addr %s138, 64
        %s140 = scalar_lea.vmem [#allocation4], %s139
        // Predicated region
        $region25: #{tpu_custom_call.1} parent=23 // pred_check
          %p141 = pneg %p58
        $region26: #{tpu_custom_call.1} parent=23 // pred_check_branch
          %143 = sbr.rel (%p141) target = $region28
        $region27: #{tpu_custom_call.1} parent=23 // pred_region
          %144 = dma.done %s137, 1024
        $region28: #{tpu_custom_call.1} parent=23 // pred_fallthru
          _
        %s145 = sand.u32 %s45, 1
        %s146 = scalar_lea.sflag [#allocation5], %s145
        %s147 = sand.u32 %s45, 1
        %s148 = smul.addr %s147, 64
        %s149 = scalar_lea.vmem [#allocation4], %s148
        %p150 = pneg %p58
        %p151 = pneg %p55
        %p152 = pneg %p86
        %p153 = pneg %p83
        %s154 = sand.u32 %s73, 1
        %s155 = scalar_lea.sflag [#allocation6], %s154
        %s156 = sand.u32 %s73, 1
        %s157 = smul.addr %s156, 64
        %s158 = scalar_lea.vmem [#allocation7], %s157
        %s159 = smul.u32 4, %s27
        %s160 = smul.u32 4, %s27
        %s161 = smul.u32 %s27, 4
        %s162 = sld [smem:[#allocation3 + %s161]]
        %p163 = scmp.ne.s32.totalorder %s162, 0
        // Predicated region
        $region29: #{tpu_custom_call.1} parent=23 // pred_check
          %p164 = pneg %p163
        $region30: #{tpu_custom_call.1} parent=23 // pred_check_branch
          %166 = sbr.rel (%p164) target = $region32
        $region31: #{tpu_custom_call.1} parent=23 // pred_region
          %v167 = vld [vmem:[%s140] sm:$0xff]
          %v168 = vld [vmem:[%s140 + $0x8] sm:$0xff]
          %v169 = vmul.f32 %v167, 1.3333334
          %v170 = vmul.f32 %v168, 1.3333334
          %171 = vst [vmem:[%s158] sm:$0xff] %v169
          %172 = vst [vmem:[%s158 + $0x8] sm:$0xff] %v170
        $region32: #{tpu_custom_call.1} parent=23 // pred_fallthru
          _
        %p173 = scmp.eq.s32.totalorder %s162, 0
        // Predicated region
        $region33: #{tpu_custom_call.1} parent=23 // pred_check
          %p174 = pneg %p173
        $region34: #{tpu_custom_call.1} parent=23 // pred_check_branch
          %176 = sbr.rel (%p174) target = $region36
        $region35: #{tpu_custom_call.1} parent=23 // pred_region
          %177 = vst [vmem:[%s158] sm:$0xff] 0.0
          %178 = vst [vmem:[%s158 + $0x8] sm:$0xff] 0.0
        $region36: #{tpu_custom_call.1} parent=23 // pred_fallthru
          _
        %s179 = sadd.s32 %s161, 1
        %s180 = sld [smem:[#allocation3 + %s179]]
        %p181 = scmp.ne.s32.totalorder %s180, 0
        // Predicated region
        $region37: #{tpu_custom_call.1} parent=23 // pred_check
          %p182 = pneg %p181
        $region38: #{tpu_custom_call.1} parent=23 // pred_check_branch
          %184 = sbr.rel (%p182) target = $region40
        $region39: #{tpu_custom_call.1} parent=23 // pred_region
          %s185 = scalar_lea.vmem %s140, 16 [#allocation4]
          %v186 = vld [vmem:[%s185] sm:$0xff]
          %v187 = vld [vmem:[%s185 + $0x8] sm:$0xff]
          %v188 = vmul.f32 %v186, 1.3333334
          %v189 = vmul.f32 %v187, 1.3333334
          %s190 = scalar_lea.vmem %s158, 16 [#allocation7]
          %191 = vst [vmem:[%s190] sm:$0xff] %v188
          %192 = vst [vmem:[%s190 + $0x8] sm:$0xff] %v189
        $region40: #{tpu_custom_call.1} parent=23 // pred_fallthru
          _
        %p193 = scmp.eq.s32.totalorder %s180, 0
        // Predicated region
        $region41: #{tpu_custom_call.1} parent=23 // pred_check
          %p194 = pneg %p193
        $region42: #{tpu_custom_call.1} parent=23 // pred_check_branch
          %196 = sbr.rel (%p194) target = $region44
        $region43: #{tpu_custom_call.1} parent=23 // pred_region
          %s197 = scalar_lea.vmem %s158, 16 [#allocation7]
          %198 = vst [vmem:[%s197] sm:$0xff] 0.0
          %199 = vst [vmem:[%s197 + $0x8] sm:$0xff] 0.0
        $region44: #{tpu_custom_call.1} parent=23 // pred_fallthru
          _
        %s200 = sadd.s32 %s161, 2
        %s201 = sld [smem:[#allocation3 + %s200]]
        %p202 = scmp.ne.s32.totalorder %s201, 0
        // Predicated region
        $region45: #{tpu_custom_call.1} parent=23 // pred_check
          %p203 = pneg %p202
        $region46: #{tpu_custom_call.1} parent=23 // pred_check_branch
          %205 = sbr.rel (%p203) target = $region48
        $region47: #{tpu_custom_call.1} parent=23 // pred_region
          %s206 = scalar_lea.vmem %s140, 32 [#allocation4]
          %v207 = vld [vmem:[%s206] sm:$0xff]
          %v208 = vld [vmem:[%s206 + $0x8] sm:$0xff]
          %v209 = vmul.f32 %v207, 1.3333334
          %v210 = vmul.f32 %v208, 1.3333334
          %s211 = scalar_lea.vmem %s158, 32 [#allocation7]
          %212 = vst [vmem:[%s211] sm:$0xff] %v209
          %213 = vst [vmem:[%s211 + $0x8] sm:$0xff] %v210
        $region48: #{tpu_custom_call.1} parent=23 // pred_fallthru
          _
        %p214 = scmp.eq.s32.totalorder %s201, 0
        // Predicated region
        $region49: #{tpu_custom_call.1} parent=23 // pred_check
          %p215 = pneg %p214
        $region50: #{tpu_custom_call.1} parent=23 // pred_check_branch
          %217 = sbr.rel (%p215) target = $region52
        $region51: #{tpu_custom_call.1} parent=23 // pred_region
          %s218 = scalar_lea.vmem %s158, 32 [#allocation7]
          %219 = vst [vmem:[%s218] sm:$0xff] 0.0
          %220 = vst [vmem:[%s218 + $0x8] sm:$0xff] 0.0
        $region52: #{tpu_custom_call.1} parent=23 // pred_fallthru
          _
        %s221 = sadd.s32 %s161, 3
        %s222 = sld [smem:[#allocation3 + %s221]]
        %p223 = scmp.ne.s32.totalorder %s222, 0
        // Predicated region
        $region53: #{tpu_custom_call.1} parent=23 // pred_check
          %p224 = pneg %p223
        $region54: #{tpu_custom_call.1} parent=23 // pred_check_branch
          %226 = sbr.rel (%p224) target = $region56
        $region55: #{tpu_custom_call.1} parent=23 // pred_region
          %s227 = scalar_lea.vmem %s140, 48 [#allocation4]
          %v228 = vld [vmem:[%s227] sm:$0xff]
          %v229 = vld [vmem:[%s227 + $0x8] sm:$0xff]
          %v230 = vmul.f32 %v228, 1.3333334
          %v231 = vmul.f32 %v229, 1.3333334
          %s232 = scalar_lea.vmem %s158, 48 [#allocation7]
          %233 = vst [vmem:[%s232] sm:$0xff] %v230
          %234 = vst [vmem:[%s232 + $0x8] sm:$0xff] %v231
        $region56: #{tpu_custom_call.1} parent=23 // pred_fallthru
          _
        %p235 = scmp.eq.s32.totalorder %s222, 0
        // Predicated region
        $region57: #{tpu_custom_call.1} parent=23 // pred_check
          %p236 = pneg %p235
        $region58: #{tpu_custom_call.1} parent=23 // pred_check_branch
          %238 = sbr.rel (%p236) target = $region60
        $region59: #{tpu_custom_call.1} parent=23 // pred_region
          %s239 = scalar_lea.vmem %s158, 48 [#allocation7]
          %240 = vst [vmem:[%s239] sm:$0xff] 0.0
          %241 = vst [vmem:[%s239 + $0x8] sm:$0xff] 0.0
        $region60: #{tpu_custom_call.1} parent=23 // pred_fallthru
          _
        %s242 = sand.u32 %s73, 1
        %s243 = scalar_lea.sflag [#allocation6], %s242
        %s244 = sand.u32 %s73, 1
        %s245 = smul.addr %s244, 64
        %s246 = scalar_lea.vmem [#allocation7], %s245
        // Predicated region
        $region61: #{tpu_custom_call.1} parent=23 // pred_check
          %p247 = pneg %p83
        $region62: #{tpu_custom_call.1} parent=23 // pred_check_branch
          %249 = sbr.rel (%p247) target = $region64
        $region63: #{tpu_custom_call.1} parent=23 // pred_region
          %s250 = smul.u32 4, %s27
          %s252 = ssub.s32 1024, 1024
          %253 = vsyncadd %s243, %s252
          %s254 = smul.addr %s28, 16
          %s255 = smul.addr %s250, 16
          %s256 = sadd.s32 %s254, %s255
          %s257 = smul.addr %s256, 16
          %s258 = scalar_lea.hbm %s2, %s257
          %s259 = sshll.u32 %s246, 4
          %s260 = int_to_ptr.vmem [resolvable:$true] %s259
          %265 = dma.vmem_to_hbm [thread:$0]  %s260, 1024, %s258, %s243, 256, 256, 16
        $region64: #{tpu_custom_call.1} parent=23 // pred_fallthru
          _
      $region24: #{tpu_custom_call.1} parent=5 // pred_fallthru
        _
      %p266 = scmp.le.s32.totalorder 2, %s18
      // Predicated region
      $region65: #{tpu_custom_call.1} parent=5 // pred_check
        %p267 = pneg %p266
      $region66: #{tpu_custom_call.1} parent=5 // pred_check_branch
        %269 = sbr.rel (%p267) target = $region68
      $region67: #{tpu_custom_call.1} parent=5 // pred_region
        %s270 = ssub.s32 %s18, 2
        // Predicated region
        $region69: #{tpu_custom_call.1} parent=67 // pred_check
          %p271 = pneg %p89
        $region70: #{tpu_custom_call.1} parent=67 // pred_check_branch
          %273 = sbr.rel (%p271) target = $region72
        $region71: #{tpu_custom_call.1} parent=67 // pred_region
          %s274 = sand.u32 %s74, 1
          %s275 = scalar_lea.sflag [#allocation6], %s274
          %s276 = sand.u32 %s74, 1
          %s277 = smul.addr %s276, 64
          %s278 = scalar_lea.vmem [#allocation7], %s277
          %279 = dma.done %s275, 1024
        $region72: #{tpu_custom_call.1} parent=67 // pred_fallthru
          _
      $region68: #{tpu_custom_call.1} parent=5 // pred_fallthru
        _
    $region6: #{tpu_custom_call.1} parent=1 // loop_footer
      %s22 = sadd.s32 1, %s18
    $region7: #{tpu_custom_call.1} parent=1 // loop_footer_branch
      %17 = sbr.rel target = $region3
    $region8: #{tpu_custom_call.1} parent=1 // loop_exit
      _
    %280 = vsyncpa [#allocation5], 1
    %s281 = scalar_lea.sflag [#allocation5], 1
    %282 = vsyncpa %s281, 1
    %283 = vsyncpa [#allocation6], 1
    %s284 = scalar_lea.sflag [#allocation6], 1
    %285 = vsyncpa %s284, 1

</llo_original>
